<compile_context>
chip_gen: v7x
topology: tpu7x:2x2x1
jax: 0.10.0
libtpu: 0.0.40
codegen_flags: <defaults>
</compile_context>

<pallas_src>
import math
import numpy as np
import jax
import jax.numpy as jnp
from jax.experimental import pallas as pl
from jax.experimental.pallas import tpu as pltpu


def _tencoder_kernel(f_ref, w_ref, adj_ref, bias_ref, out_ref):
    # f_ref:    (N*C, Din*C)   compute dtype (bf16 by default)
    # w_ref:    (Din*C, C*Dout)
    # adj_ref:  (TM, N*C)      row tile of the flattened adjacency
    # bias_ref: (TM, C*Dout)   f32
    # out_ref:  (TM, C*Dout)   f32
    # Stage 1: block-circulant "support" — one MXU matmul (channel circular conv
    # folded into the K dimension, accumulation inside the MXU).
    s_circ = jnp.dot(f_ref[...], w_ref[...], preferred_element_type=jnp.float32)
    # Stage 2: adjacency contraction; K = N*C again fuses the channel conv.
    out = jnp.dot(adj_ref[...], s_circ.astype(adj_ref.dtype),
                  preferred_element_type=jnp.float32)
    out_ref[...] = out + bias_ref[...]


def tencoder_layer(features, adj, weight, bias, *,
                   compute_dtype=jnp.bfloat16, row_tile=256):
    """TEncoderlayer.forward.

    features: (num_nodes, dim_in, num_channels)
    adj:      (num_nodes, num_nodes, num_channels)   (dense)
    weight:   (dim_in, dim_out, num_channels)
    bias:     (num_nodes, dim_out, num_channels) or None
    returns   (num_nodes, dim_out, num_channels), float32
    """
    N, Din, C = features.shape
    Dout = weight.shape[1]
    CD = C * Dout

    # Circular-shift index table: cidx[a, b] = (b - a) % C   (tiny, C x C).
    cidx = (jnp.arange(C)[None, :] - jnp.arange(C)[:, None]) % C

    # W_circ[(j, cc), (c, r)] = weight[j, r, (c - cc) % C]
    w_g = weight[:, :, cidx]                                   # (Din, Dout, cc, c)
    w_circ = jnp.transpose(w_g, (0, 2, 3, 1)).reshape(Din * C, CD)

    # F_circ[(n, c'), (j, cc)] = features[n, j, (cc - c') % C]
    f_g = features[:, :, cidx]                                 # (N, Din, c', cc)
    f_circ = jnp.transpose(f_g, (0, 2, 1, 3)).reshape(N * C, Din * C)

    # Big tensor: just a reshape (columns ordered (n, c')) — NO HBM transpose.
    adj_flat = adj.reshape(N, N * C)

    if bias is None:
        bias_flat = jnp.zeros((N, CD), jnp.float32)
    else:
        bias_flat = jnp.transpose(bias, (0, 2, 1)).reshape(N, CD).astype(jnp.float32)

    # MXU-native dtype for the matmul operands, f32 accumulation in the kernel.
    f_circ = f_circ.astype(compute_dtype)
    w_circ = w_circ.astype(compute_dtype)
    adj_flat = adj_flat.astype(compute_dtype)

    tm = int(min(N, row_tile))
    grid = (pl.cdiv(N, tm),)

    # Explicit VMEM budget: double-buffered tiles + resident circulants + headroom,
    # clamped to stay well inside v7x's 64 MiB physical VMEM.
    isz = jnp.dtype(compute_dtype).itemsize
    est = (2 * tm * (N * C) * isz            # adj row tile, double-buffered
           + 2 * tm * CD * 4                 # bias tile (f32)
           + 2 * tm * CD * 4                 # out tile (f32)
           + (N * C) * (Din * C) * isz       # F_circ (resident)
           + (Din * C) * CD * isz            # W_circ (resident)
           + (N * C) * CD * 4)               # s_circ intermediate (f32)
    vmem_limit = int(min(48 * 1024 * 1024, max(16 * 1024 * 1024, 4 * est)))

    out_flat = pl.pallas_call(
        _tencoder_kernel,
        out_shape=jax.ShapeDtypeStruct((N, CD), jnp.float32),
        grid=grid,
        in_specs=[
            pl.BlockSpec((N * C, Din * C), lambda i: (0, 0)),   # F_circ (whole)
            pl.BlockSpec((Din * C, CD), lambda i: (0, 0)),      # W_circ (whole)
            pl.BlockSpec((tm, N * C), lambda i: (i, 0)),        # adj row tile
            pl.BlockSpec((tm, CD), lambda i: (i, 0)),           # bias row tile
        ],
        out_specs=pl.BlockSpec((tm, CD), lambda i: (i, 0)),
        compiler_params=pltpu.CompilerParams(
            dimension_semantics=("parallel",),                  # shards rows on v7x 2 TCs
            vmem_limit_bytes=vmem_limit,
        ),
    )(f_circ, w_circ, adj_flat, bias_flat)

    # Back to the module's channel-last layout (N, Dout, C).
    return jnp.transpose(out_flat.reshape(N, C, Dout), (0, 2, 1))


def _ref_fft_product(X, W):
    # numpy reference with identical semantics to the torch fft_product
    Xf = np.fft.fft(X, axis=-1)
    Wf = np.fft.fft(W, axis=-1)
    return np.fft.ifft(np.einsum('ijk,jrk->irk', Xf, Wf), axis=-1).real


if __name__ == "__main__":
    num_nodes, dim_in, dim_out, num_channels = 8, 16, 8, 4

    key = jax.random.PRNGKey(0)
    k_w, k_b, k_f, k_a = jax.random.split(key, 4)

    # deterministic parameter init mirroring reset_parameters():
    # uniform(-stdv, stdv) with stdv = 1/sqrt(dim_out)
    stdv = 1.0 / math.sqrt(dim_out)
    weight = jax.random.uniform(
        k_w, (dim_in, dim_out, num_channels), jnp.float32, -stdv, stdv)
    bias = jax.random.uniform(
        k_b, (num_nodes, dim_out, num_channels), jnp.float32, -stdv, stdv)
    features = jax.random.normal(
        k_f, (num_nodes, dim_in, num_channels), jnp.float32)
    adj = jax.random.uniform(
        k_a, (num_nodes, num_nodes, num_channels), jnp.float32)

    # reference: float64 numpy FFT formulation (exactly the torch forward)
    f_np = np.asarray(features, np.float64)
    a_np = np.asarray(adj, np.float64)
    w_np = np.asarray(weight, np.float64)
    b_np = np.asarray(bias, np.float64)
    ref = _ref_fft_product(a_np, _ref_fft_product(f_np, w_np)) + b_np

    # strict correctness check: f32 MXU inputs
    out_f32 = jax.block_until_ready(
        tencoder_layer(features, adj, weight, bias, compute_dtype=jnp.float32))
    err32 = float(np.max(np.abs(np.asarray(out_f32) - ref)))
    assert np.allclose(np.asarray(out_f32), ref, atol=1e-3, rtol=1e-3), (
        "f32 path max abs err = %g" % err32)

    # default (performance) path: bf16 MXU inputs, f32 accumulation
    out_bf16 = jax.block_until_ready(tencoder_layer(features, adj, weight, bias))
    err16 = float(np.max(np.abs(np.asarray(out_bf16) - ref)))
    assert np.allclose(np.asarray(out_bf16), ref, atol=2e-1, rtol=5e-2), (
        "bf16 path max abs err = %g" % err16)

    print("KERNEL_OK")
</pallas_src>

<mosaic_0001>
module attributes {stable_mosaic.version = 11 : i64} {
  func.func @_tencoder_kernel(%arg0: i32, %arg1: memref<32x64xf32, #tpu.memory_space<vmem>>, %arg2: memref<64x32xf32, #tpu.memory_space<vmem>>, %arg3: memref<8x32xf32, #tpu.memory_space<vmem>>, %arg4: memref<8x32xf32, #tpu.memory_space<vmem>>, %arg5: memref<8x32xf32, #tpu.memory_space<vmem>>) attributes {dimension_semantics = [#tpu.dimension_semantics<parallel>], iteration_bounds = array<i64: 1>, scalar_prefetch = 0 : i64, scratch_operands = 0 : i64, tpu.core_type = #tpu.core_type<tc>, window_params = [{pipeline_mode = #tpu.pipeline_mode<synchronous>, transform_indices = @transform_0, window_bounds = array<i64: 32, 64>}, {pipeline_mode = #tpu.pipeline_mode<synchronous>, transform_indices = @transform_1, window_bounds = array<i64: 64, 32>}, {transform_indices = @transform_2, window_bounds = array<i64: 8, 32>}, {transform_indices = @transform_3, window_bounds = array<i64: 8, 32>}, {transform_indices = @transform_4, window_bounds = array<i64: 8, 32>}]} {
    %c0 = arith.constant 0 : index
    %c0_0 = arith.constant 0 : index
    %0 = vector.load %arg1[%c0, %c0_0] : memref<32x64xf32, #tpu.memory_space<vmem>>, vector<32x64xf32>
    %c0_1 = arith.constant 0 : index
    %c0_2 = arith.constant 0 : index
    %1 = vector.load %arg2[%c0_1, %c0_2] : memref<64x32xf32, #tpu.memory_space<vmem>>, vector<64x32xf32>
    %cst = arith.constant dense<0.000000e+00> : vector<32x32xf32>
    %2 = tpu.matmul %0, %1, %cst {dimension_numbers = #tpu.dot_dimension_numbers<[1], [0], [0], [1], [0, 0, 1, 1], [], []>} : vector<32x64xf32>, vector<64x32xf32>, vector<32x32xf32> -> vector<32x32xf32>
    %c0_3 = arith.constant 0 : index
    %c0_4 = arith.constant 0 : index
    %3 = vector.load %arg3[%c0_3, %c0_4] : memref<8x32xf32, #tpu.memory_space<vmem>>, vector<8x32xf32>
    %cst_5 = arith.constant dense<0.000000e+00> : vector<8x32xf32>
    %4 = tpu.matmul %3, %2, %cst_5 {dimension_numbers = #tpu.dot_dimension_numbers<[1], [0], [0], [1], [0, 0, 1, 1], [], []>} : vector<8x32xf32>, vector<32x32xf32>, vector<8x32xf32> -> vector<8x32xf32>
    %c0_6 = arith.constant 0 : index
    %c0_7 = arith.constant 0 : index
    %5 = vector.load %arg4[%c0_6, %c0_7] : memref<8x32xf32, #tpu.memory_space<vmem>>, vector<8x32xf32>
    %6 = arith.addf %4, %5 : vector<8x32xf32>
    %c0_8 = arith.constant 0 : index
    %c0_9 = arith.constant 0 : index
    %7 = vector.load %arg5[%c0_8, %c0_9] : memref<8x32xf32, #tpu.memory_space<vmem>>, vector<8x32xf32>
    tpu.vector_store %arg5[%c0_8, %c0_9], %6 {strides = array<i32>} : memref<8x32xf32, #tpu.memory_space<vmem>>, vector<8x32xf32>,
    return
  }
  func.func @transform_0(%arg0: i32) -> (i32, i32) {
    %c0_i32 = arith.constant 0 : i32
    %c0_i32_0 = arith.constant 0 : i32
    %c0_i32_1 = arith.constant 0 : i32
    return %c0_i32, %c0_i32_0 : i32, i32
  }
  func.func @transform_1(%arg0: i32) -> (i32, i32) {
    %c0_i32 = arith.constant 0 : i32
    %c0_i32_0 = arith.constant 0 : i32
    %c0_i32_1 = arith.constant 0 : i32
    return %c0_i32, %c0_i32_0 : i32, i32
  }
  func.func @transform_2(%arg0: i32) -> (i32, i32) {
    %c0_i32 = arith.constant 0 : i32
    %c0_i32_0 = arith.constant 0 : i32
    return %arg0, %c0_i32 : i32, i32
  }
  func.func @transform_3(%arg0: i32) -> (i32, i32) {
    %c0_i32 = arith.constant 0 : i32
    %c0_i32_0 = arith.constant 0 : i32
    return %arg0, %c0_i32 : i32, i32
  }
  func.func @transform_4(%arg0: i32) -> (i32, i32) {
    %c0_i32 = arith.constant 0 : i32
    %c0_i32_0 = arith.constant 0 : i32
    return %arg0, %c0_i32 : i32, i32
  }
}

</mosaic_0001>

<llo_original>
// kernel: tpu_custom_call.1
$region0: #{tpu_custom_call.1}
  #allocation0 [shape = 'u32[]', space=smem, size = 0x4, offset = 0x4, fixed_abs, tag = 'smem constant byte address 0x4 - core index']
  #allocation1 [shape = 'u32[144,128]{1,0:T(1,128)}', space=vmem, size = 0x12000, scoped, tag = 'internal scratch']
  %s0 = inlined_call_operand.vmem [shape: f32[32,64], index: 0, kind: input, shape index: {}]
  %s1 = inlined_call_operand.vmem [shape: f32[64,32], index: 1, kind: input, shape index: {}]
  %s2 = inlined_call_operand.vmem [shape: f32[8,32], index: 2, kind: input, shape index: {}]
  %s3 = inlined_call_operand.vmem [shape: f32[8,32], index: 3, kind: input, shape index: {}]
  %s4 = inlined_call_operand.hbm [shape: f32[8,32], index: 4, kind: output, shape index: {}]
  %s5 = sld [smem:[#allocation0]]
  $region26: #{tpu_custom_call.1} parent=0
    _
  %s7 = ssub.s32 1, %s5
  %s8 = scalar_select 0, %s7, %s5
  $region1: #{tpu_custom_call.1} parent=0
    #allocation2 [shape = 'u8[4096]{0}', space=vmem, size = 0x1000, scoped, tag = 'output window, operand 0, single buffered']
    #allocation3 [shape = 's32[1]{0}', space=sflag, size = 0x4, scoped, tag = 'scoped memory for tpu_custom_call.1']
    %9 = vsyncpa [#allocation3], 0
    // Predicated region
    $region2: #{tpu_custom_call.1} parent=1 // pred_check
      _
    $region3: #{tpu_custom_call.1} parent=1 // pred_check_branch
      %11 = sbr.rel (0) target = $region5
    $region4: #{tpu_custom_call.1} parent=1 // pred_region
      _
    $region5: #{tpu_custom_call.1} parent=1 // pred_fallthru
      _
    // Predicated region
    $region6: #{tpu_custom_call.1} parent=1 // pred_check
      _
    $region7: #{tpu_custom_call.1} parent=1 // pred_check_branch
      %13 = sbr.rel (0) target = $region9
    $region8: #{tpu_custom_call.1} parent=1 // pred_region
      _
    $region9: #{tpu_custom_call.1} parent=1 // pred_fallthru
      _
    // Predicated region
    $region10: #{tpu_custom_call.1} parent=1 // pred_check
      _
    $region11: #{tpu_custom_call.1} parent=1 // pred_check_branch
      %15 = sbr.rel (0) target = $region13
    $region12: #{tpu_custom_call.1} parent=1 // pred_region
      _
    $region13: #{tpu_custom_call.1} parent=1 // pred_fallthru
      _
    // Predicated region
    $region14: #{tpu_custom_call.1} parent=1 // pred_check
      _
    $region15: #{tpu_custom_call.1} parent=1 // pred_check_branch
      %17 = sbr.rel (0) target = $region17
    $region16: #{tpu_custom_call.1} parent=1 // pred_region
      _
    $region17: #{tpu_custom_call.1} parent=1 // pred_fallthru
      _
    %v18 = vld [vmem:[%s0] sm:$0xff]
    %v19 = vld [vmem:[%s0 + $0x8] sm:$0xff]
    %v20 = vld [vmem:[%s0 + $0x10] sm:$0xff]
    %v21 = vld [vmem:[%s0 + $0x18] sm:$0xff]
    %v22 = vld [vmem:[%s1] sm:$0xff]
    %v23 = vld [vmem:[%s1 + $0x8] sm:$0xff]
    %v24 = vld [vmem:[%s1 + $0x10] sm:$0xff]
    %v25 = vld [vmem:[%s1 + $0x18] sm:$0xff]
    %v26 = vld [vmem:[%s1 + $0x20] sm:$0xff]
    %v27 = vld [vmem:[%s1 + $0x28] sm:$0xff]
    %v28 = vld [vmem:[%s1 + $0x30] sm:$0xff]
    %v29 = vld [vmem:[%s1 + $0x38] sm:$0xff]
    %vm30 = vcmask 523264
    %v32 = vsel %vm30, %v18, 0
    %v35 = vsel %vm30, %v19, 0
    %v38 = vsel %vm30, %v20, 0
    %v41 = vsel %vm30, %v21, 0
    %43 = vmatprep.subr.mxu0 0.0
    %44 = vmatpush1.msra.mxu0 %v22
    %45 = vmatprep.subr.mxu0 0.0
    %46 = vmatpush1.msra.mxu0 %v23
    %47 = vmatprep.subr.mxu0 0.0
    %48 = vmatpush1.msra.mxu0 %v24
    %49 = vmatprep.subr.mxu0 0.0
    %50 = vmatpush1.msra.mxu0 %v25
    %51 = vmatprep.subr.mxu0 0.0
    %52 = vmatpush1.msra.mxu0 %v26
    %53 = vmatprep.subr.mxu0 0.0
    %54 = vmatpush1.msra.mxu0 %v27
    %55 = vmatprep.subr.mxu0 0.0
    %56 = vmatpush1.msra.mxu0 %v28
    %57 = vmatprep.subr.mxu0 0.0
    %58 = vmatpush1.msra.mxu0 %v29
    %59 = vmatprep.subr.mxu0 0.0
    %60 = vmatpush1.msra.mxu0 0.0
    %61 = vmatprep.subr.mxu0 0.0
    %62 = vmatpush1.msra.mxu0 0.0
    %63 = vmatprep.subr.mxu0 0.0
    %64 = vmatpush1.msra.mxu0 0.0
    %65 = vmatprep.subr.mxu0 0.0
    %66 = vmatpush1.msra.mxu0 0.0
    %67 = vmatprep.subr.mxu0 0.0
    %68 = vmatpush1.msra.mxu0 0.0
    %69 = vmatprep.subr.mxu0 0.0
    %70 = vmatpush1.msra.mxu0 0.0
    %71 = vmatprep.subr.mxu0 0.0
    %72 = vmatpush1.msra.mxu0 0.0
    %73 = vmatprep.subr.mxu0 0.0
    %74 = vmatpush1.msra.mxu0 0.0
    %75 = vmatprep.subr.mxu0 0.0
    %76 = vmatpush1.msra.mxu0 0.0
    %77 = vmatprep.subr.mxu0 0.0
    %78 = vmatpush1.msra.mxu0 0.0
    %79 = vmatprep.subr.mxu0 0.0
    %80 = vmatpush1.msra.mxu0 0.0
    %81 = vmatprep.subr.mxu0 0.0
    %82 = vmatpush1.msra.mxu0 0.0
    %83 = vmatprep.subr.mxu0 0.0
    %84 = vmatpush1.msra.mxu0 0.0
    %85 = vmatprep.subr.mxu0 0.0
    %86 = vmatpush1.msra.mxu0 0.0
    %87 = vmatprep.subr.mxu0 0.0
    %88 = vmatpush1.msra.mxu0 0.0
    %89 = vmatprep.subr.mxu0 0.0
    %90 = vmatpush1.msra.mxu0 0.0
    %91 = vmatprep.subr.mxu0 0.0
    %92 = vmatpush1.msra.mxu0 0.0
    %93 = vmatprep.subr.mxu0 0.0
    %94 = vmatpush1.msra.mxu0 0.0
    %95 = vmatprep.subr.mxu0 0.0
    %96 = vmatpush1.msra.mxu0 0.0
    %97 = vmatprep.subr.mxu0 0.0
    %98 = vmatpush1.msra.mxu0 0.0
    %99 = vmatprep.subr.mxu0 0.0
    %100 = vmatpush1.msra.mxu0 0.0
    %101 = vmatprep.subr.mxu0 0.0
    %102 = vmatpush1.msra.mxu0 0.0
    %103 = vmatprep.subr.mxu0 0.0
    %104 = vmatpush1.msra.mxu0 0.0
    %105 = vmatprep.subr.mxu0 0.0
    %106 = vmatpush1.msra.mxu0 0.0
    %107 = vmatprep.mubr.f32.mxu0 0.0
    %108 = vmatmul.mubr.f32.gmra.mrb[0].mxu0 %v32
    %v109 = vpop.f32.mrb[0].mxu0
    %v110 = vadd.f32 0.0, %v109
    %v111 = vpop.f32.mrb[0].mxu0
    %112 = vmatprep.mubr.f32.mxu0 0.0
    %113 = vmatmul.mubr.f32.gmra.mrb[0].mxu0 %v35
    %v114 = vpop.f32.mrb[0].mxu0
    %v115 = vadd.f32 0.0, %v114
    %v116 = vpop.f32.mrb[0].mxu0
    %117 = vmatprep.mubr.f32.mxu0 0.0
    %118 = vmatmul.mubr.f32.gmra.mrb[0].mxu0 %v38
    %v119 = vpop.f32.mrb[0].mxu0
    %v120 = vadd.f32 0.0, %v119
    %v121 = vpop.f32.mrb[0].mxu0
    %122 = vmatprep.mubr.f32.mxu0 0.0
    %123 = vmatmul.mubr.f32.gmra.mrb[0].mxu0 %v41
    %v124 = vpop.f32.mrb[0].mxu0
    %v125 = vadd.f32 0.0, %v124
    %v126 = vpop.f32.mrb[0].mxu0
    %127 = vdwg.mxu0
    %v128 = vld [vmem:[%s2] sm:$0xff]
    %v129 = vld [vmem:[%s3] sm:$0xff]
    %vm130 = vcmask 261120
    %v132 = vsel %vm130, %v128, 0
    %134 = vmatprep.subr.mxu0 0.0
    %135 = vmatpush1.msra.mxu0 %v110
    %136 = vmatprep.subr.mxu0 0.0
    %137 = vmatpush1.msra.mxu0 %v115
    %138 = vmatprep.subr.mxu0 0.0
    %139 = vmatpush1.msra.mxu0 %v120
    %140 = vmatprep.subr.mxu0 0.0
    %141 = vmatpush1.msra.mxu0 %v125
    %142 = vmatprep.subr.mxu0 0.0
    %143 = vmatpush1.msra.mxu0 0.0
    %144 = vmatprep.subr.mxu0 0.0
    %145 = vmatpush1.msra.mxu0 0.0
    %146 = vmatprep.subr.mxu0 0.0
    %147 = vmatpush1.msra.mxu0 0.0
    %148 = vmatprep.subr.mxu0 0.0
    %149 = vmatpush1.msra.mxu0 0.0
    %150 = vmatprep.subr.mxu0 0.0
    %151 = vmatpush1.msra.mxu0 0.0
    %152 = vmatprep.subr.mxu0 0.0
    %153 = vmatpush1.msra.mxu0 0.0
    %154 = vmatprep.subr.mxu0 0.0
    %155 = vmatpush1.msra.mxu0 0.0
    %156 = vmatprep.subr.mxu0 0.0
    %157 = vmatpush1.msra.mxu0 0.0
    %158 = vmatprep.subr.mxu0 0.0
    %159 = vmatpush1.msra.mxu0 0.0
    %160 = vmatprep.subr.mxu0 0.0
    %161 = vmatpush1.msra.mxu0 0.0
    %162 = vmatprep.subr.mxu0 0.0
    %163 = vmatpush1.msra.mxu0 0.0
    %164 = vmatprep.subr.mxu0 0.0
    %165 = vmatpush1.msra.mxu0 0.0
    %166 = vmatprep.subr.mxu0 0.0
    %167 = vmatpush1.msra.mxu0 0.0
    %168 = vmatprep.subr.mxu0 0.0
    %169 = vmatpush1.msra.mxu0 0.0
    %170 = vmatprep.subr.mxu0 0.0
    %171 = vmatpush1.msra.mxu0 0.0
    %172 = vmatprep.subr.mxu0 0.0
    %173 = vmatpush1.msra.mxu0 0.0
    %174 = vmatprep.subr.mxu0 0.0
    %175 = vmatpush1.msra.mxu0 0.0
    %176 = vmatprep.subr.mxu0 0.0
    %177 = vmatpush1.msra.mxu0 0.0
    %178 = vmatprep.subr.mxu0 0.0
    %179 = vmatpush1.msra.mxu0 0.0
    %180 = vmatprep.subr.mxu0 0.0
    %181 = vmatpush1.msra.mxu0 0.0
    %182 = vmatprep.subr.mxu0 0.0
    %183 = vmatpush1.msra.mxu0 0.0
    %184 = vmatprep.subr.mxu0 0.0
    %185 = vmatpush1.msra.mxu0 0.0
    %186 = vmatprep.subr.mxu0 0.0
    %187 = vmatpush1.msra.mxu0 0.0
    %188 = vmatprep.subr.mxu0 0.0
    %189 = vmatpush1.msra.mxu0 0.0
    %190 = vmatprep.subr.mxu0 0.0
    %191 = vmatpush1.msra.mxu0 0.0
    %192 = vmatprep.subr.mxu0 0.0
    %193 = vmatpush1.msra.mxu0 0.0
    %194 = vmatprep.subr.mxu0 0.0
    %195 = vmatpush1.msra.mxu0 0.0
    %196 = vmatprep.subr.mxu0 0.0
    %197 = vmatpush1.msra.mxu0 0.0
    %198 = vmatprep.mubr.f32.mxu0 0.0
    %199 = vmatmul.mubr.f32.gmra.mrb[0].mxu0 %v132
    %v200 = vpop.f32.mrb[0].mxu0
    %v201 = vadd.f32 %v129, %v200
    %v202 = vpop.f32.mrb[0].mxu0
    %203 = vdwg.mxu0
    %204 = vst.msk [vmem:[#allocation2] sm:$0xff] %vm130, %v201
    // Predicated region
    $region18: #{tpu_custom_call.1} parent=1 // pred_check
      _
    $region19: #{tpu_custom_call.1} parent=1 // pred_check_branch
      %206 = sbr.rel (0) target = $region21
    $region20: #{tpu_custom_call.1} parent=1 // pred_region
      %s208 = ssub.s32 128, 128
      %209 = vsyncadd [#allocation3], %s208
      %s211 = sshll.u32 [#allocation2], 4
      %s212 = int_to_ptr.vmem [resolvable:$true] %s211
      %214 = dma.vmem_to_hbm [thread:$0]  %s212, 128, %s4, [#allocation3]
    $region21: #{tpu_custom_call.1} parent=1 // pred_fallthru
      _
    // Predicated region
    $region22: #{tpu_custom_call.1} parent=1 // pred_check
      _
    $region23: #{tpu_custom_call.1} parent=1 // pred_check_branch
      %216 = sbr.rel (0) target = $region25
    $region24: #{tpu_custom_call.1} parent=1 // pred_region
      %217 = dma.done [#allocation3], 128
    $region25: #{tpu_custom_call.1} parent=1 // pred_fallthru
      _
    %218 = vsyncpa [#allocation3], 1

</llo_original>
